<compile_context>
chip_gen: v5e
topology: v5e:2x2
jax: 0.10.0
libtpu: 0.0.40
codegen_flags: <defaults>
</compile_context>

<pallas_src>
import jax
import jax.numpy as jnp
from jax.experimental import pallas as pl
from jax.experimental.pallas import tpu as pltpu


def _select_fusion_kernel(x_ref, y_ref, wx_ref, wy_ref, o_ref):
    x = x_ref[...]                       # (C, T)  native dtype
    y = y_ref[...]                       # (C, T)
    wx = wx_ref[...]                     # (2C, C) = [W1; W3a]
    wy = wy_ref[...]                     # (2C, C) = [W2; W3b]
    C = wx.shape[1]

    # Two fused channel-mix matmuls; rows 0:C = mask pre-activation,
    # rows C:2C = fusion contribution.  f32 accumulation on the MXU.
    px = jnp.dot(wx, x, preferred_element_type=jnp.float32)   # (2C, T)
    py = jnp.dot(wy, y, preferred_element_type=jnp.float32)   # (2C, T)

    x_mask = jax.nn.sigmoid(px[:C, :])
    y_mask = jax.nn.sigmoid(py[:C, :])
    fusion = px[C:, :] + py[C:, :]

    # Elementwise tail in f32 (safe on v5e which has no bf16 VPU/EUP path).
    out = jax.nn.relu(x.astype(jnp.float32) + y.astype(jnp.float32)
                      + fusion * (x_mask + y_mask))
    o_ref[...] = out.astype(o_ref.dtype)


def select_fusion1(x_nchw, y_nchw, w1, w2, w3, *, max_tile_hw=2048):
    """x_nchw, y_nchw: (B, N, H, W). w1, w2: (N, N). w3: (N, 2N)."""
    B, C, H, W = x_nchw.shape
    HW = H * W

    # Channel-major view of NCHW (free reshape, no transpose).
    x3 = x_nchw.reshape(B, C, HW)
    y3 = y_nchw.reshape(B, C, HW)

    # Lane-dense pixel tile: a multiple of 128, capped at max_tile_hw.
    tile_hw = min(max_tile_hw, ((HW + 127) // 128) * 128)
    tile_hw = max(128, (tile_hw // 128) * 128)
    n_t = (HW + tile_hw - 1) // tile_hw
    HW_pad = n_t * tile_hw
    if HW_pad != HW:
        pad = ((0, 0), (0, 0), (0, HW_pad - HW))
        x3 = jnp.pad(x3, pad)
        y3 = jnp.pad(y3, pad)

    # Fuse the four weight matmuls into two.
    wx = jnp.concatenate([w1, w3[:, :C]], axis=0)   # (2C, C) acts on x
    wy = jnp.concatenate([w2, w3[:, C:]], axis=0)   # (2C, C) acts on y

    # Batch dim squeezed out of the kernel view -> kernel sees (C, tile_hw).
    px_spec = pl.BlockSpec((None, C, tile_hw), lambda b, t: (b, 0, t))
    w_spec = pl.BlockSpec((2 * C, C), lambda b, t: (0, 0))

    out3 = pl.pallas_call(
        _select_fusion_kernel,
        out_shape=jax.ShapeDtypeStruct((B, C, HW_pad), x_nchw.dtype),
        grid_spec=pltpu.PrefetchScalarGridSpec(
            num_scalar_prefetch=0,
            grid=(B, n_t),
            in_specs=[px_spec, px_spec, w_spec, w_spec],
            out_specs=px_spec,
        ),
        compiler_params=pltpu.CompilerParams(
            dimension_semantics=("parallel", "parallel")),
    )(x3, y3, wx, wy)

    out3 = out3[:, :, :HW] if HW_pad != HW else out3
    return out3.reshape(B, C, H, W)


def _reference(x, y, w1, w2, w3):
    """Pure-JAX reference mirroring the PyTorch forward (1x1 convs, NCHW)."""
    def conv1x1(inp, w):  # inp: (B, Cin, H, W), w: (Cout, Cin)
        return jnp.einsum('oc,bchw->bohw', w, inp)
    x_mask = jax.nn.sigmoid(conv1x1(x, w1))
    y_mask = jax.nn.sigmoid(conv1x1(y, w2))
    fusion = conv1x1(jnp.concatenate([x, y], axis=1), w3)
    return jax.nn.relu(x + y + fusion * y_mask + fusion * x_mask)


if __name__ == "__main__":
    key = jax.random.PRNGKey(0)
    B, N, H, W = 2, 4, 16, 16

    k_x, k_y, k_w1, k_w2, k_w3 = jax.random.split(key, 5)
    x = jax.random.normal(k_x, (B, N, H, W), dtype=jnp.float32)
    y = jax.random.normal(k_y, (B, N, H, W), dtype=jnp.float32)

    # Conv2d(N, N, 1, bias=False) -> (N, N); Conv2d(2N, N, 1) -> (N, 2N).
    w1 = jax.random.normal(k_w1, (N, N), dtype=jnp.float32) * 0.1
    w2 = jax.random.normal(k_w2, (N, N), dtype=jnp.float32) * 0.1
    w3 = jax.random.normal(k_w3, (N, 2 * N), dtype=jnp.float32) * 0.1

    out = select_fusion1(x, y, w1, w2, w3)
    out = jax.block_until_ready(out)

    ref = _reference(x, y, w1, w2, w3)
    assert out.shape == (B, N, H, W)
    assert jnp.allclose(out, ref, atol=1e-5, rtol=1e-5)

    print("KERNEL_OK")
</pallas_src>

<mosaic_0001>
module attributes {stable_mosaic.version = 11 : i64} {
  func.func @_select_fusion_kernel(%arg0: i32, %arg1: i32, %arg2: memref<1x4x256xf32, #tpu.memory_space<vmem>>, %arg3: memref<1x4x256xf32, #tpu.memory_space<vmem>>, %arg4: memref<8x4xf32, #tpu.memory_space<vmem>>, %arg5: memref<8x4xf32, #tpu.memory_space<vmem>>, %arg6: memref<1x4x256xf32, #tpu.memory_space<vmem>>) attributes {dimension_semantics = [#tpu.dimension_semantics<parallel>, #tpu.dimension_semantics<parallel>], iteration_bounds = array<i64: 2, 1>, scalar_prefetch = 0 : i64, scratch_operands = 0 : i64, tpu.core_type = #tpu.core_type<tc>, window_params = [{transform_indices = @transform_0, window_bounds = array<i64: 1, 4, 256>}, {transform_indices = @transform_1, window_bounds = array<i64: 1, 4, 256>}, {pipeline_mode = #tpu.pipeline_mode<synchronous>, transform_indices = @transform_2, window_bounds = array<i64: 8, 4>}, {pipeline_mode = #tpu.pipeline_mode<synchronous>, transform_indices = @transform_3, window_bounds = array<i64: 8, 4>}, {transform_indices = @transform_4, window_bounds = array<i64: 1, 4, 256>}]} {
    %c0 = arith.constant 0 : index
    %c0_0 = arith.constant 0 : index
    %c0_1 = arith.constant 0 : index
    %0 = vector.load %arg2[%c0, %c0_0, %c0_1] : memref<1x4x256xf32, #tpu.memory_space<vmem>>, vector<1x4x256xf32>
    %1 = vector.shape_cast %0 : vector<1x4x256xf32> to vector<4x256xf32>
    %c0_2 = arith.constant 0 : index
    %c0_3 = arith.constant 0 : index
    %c0_4 = arith.constant 0 : index
    %2 = vector.load %arg3[%c0_2, %c0_3, %c0_4] : memref<1x4x256xf32, #tpu.memory_space<vmem>>, vector<1x4x256xf32>
    %3 = vector.shape_cast %2 : vector<1x4x256xf32> to vector<4x256xf32>
    %c0_5 = arith.constant 0 : index
    %c0_6 = arith.constant 0 : index
    %4 = vector.load %arg4[%c0_5, %c0_6] : memref<8x4xf32, #tpu.memory_space<vmem>>, vector<8x4xf32>
    %c0_7 = arith.constant 0 : index
    %c0_8 = arith.constant 0 : index
    %5 = vector.load %arg5[%c0_7, %c0_8] : memref<8x4xf32, #tpu.memory_space<vmem>>, vector<8x4xf32>
    %cst = arith.constant dense<0.000000e+00> : vector<8x256xf32>
    %6 = tpu.matmul %4, %1, %cst {dimension_numbers = #tpu.dot_dimension_numbers<[1], [0], [0], [1], [0, 0, 1, 1], [], []>} : vector<8x4xf32>, vector<4x256xf32>, vector<8x256xf32> -> vector<8x256xf32>
    %cst_9 = arith.constant dense<0.000000e+00> : vector<8x256xf32>
    %7 = tpu.matmul %5, %3, %cst_9 {dimension_numbers = #tpu.dot_dimension_numbers<[1], [0], [0], [1], [0, 0, 1, 1], [], []>} : vector<8x4xf32>, vector<4x256xf32>, vector<8x256xf32> -> vector<8x256xf32>
    %8 = vector.extract_strided_slice %6 {offsets = [0, 0], sizes = [4, 256], strides = [1, 1]} : vector<8x256xf32> to vector<4x256xf32>
    %9 = arith.negf %8 : vector<4x256xf32>
    %10 = math.exp %9 : vector<4x256xf32>
    %cst_10 = arith.constant 1.000000e+00 : f32
    %11 = vector.broadcast %cst_10 : f32 to vector<4x256xf32>
    %12 = arith.addf %11, %10 : vector<4x256xf32>
    %13 = arith.divf %11, %12 : vector<4x256xf32>
    %14 = vector.extract_strided_slice %7 {offsets = [0, 0], sizes = [4, 256], strides = [1, 1]} : vector<8x256xf32> to vector<4x256xf32>
    %15 = arith.negf %14 : vector<4x256xf32>
    %16 = math.exp %15 : vector<4x256xf32>
    %cst_11 = arith.constant 1.000000e+00 : f32
    %17 = vector.broadcast %cst_11 : f32 to vector<4x256xf32>
    %18 = arith.addf %17, %16 : vector<4x256xf32>
    %19 = arith.divf %17, %18 : vector<4x256xf32>
    %20 = vector.extract_strided_slice %6 {offsets = [4, 0], sizes = [4, 256], strides = [1, 1]} : vector<8x256xf32> to vector<4x256xf32>
    %21 = vector.extract_strided_slice %7 {offsets = [4, 0], sizes = [4, 256], strides = [1, 1]} : vector<8x256xf32> to vector<4x256xf32>
    %22 = arith.addf %20, %21 : vector<4x256xf32>
    %23 = arith.addf %1, %3 : vector<4x256xf32>
    %24 = arith.addf %13, %19 : vector<4x256xf32>
    %25 = arith.mulf %22, %24 : vector<4x256xf32>
    %26 = arith.addf %23, %25 : vector<4x256xf32>
    %cst_12 = arith.constant 0.000000e+00 : f32
    %27 = vector.broadcast %cst_12 : f32 to vector<4x256xf32>
    %28 = arith.maximumf %26, %27 : vector<4x256xf32>
    %c0_13 = arith.constant 0 : index
    %c0_14 = arith.constant 0 : index
    %c0_15 = arith.constant 0 : index
    %29 = vector.load %arg6[%c0_13, %c0_14, %c0_15] : memref<1x4x256xf32, #tpu.memory_space<vmem>>, vector<1x4x256xf32>
    %30 = vector.shape_cast %29 : vector<1x4x256xf32> to vector<4x256xf32>
    %31 = vector.shape_cast %28 : vector<4x256xf32> to vector<1x4x256xf32>
    tpu.vector_store %arg6[%c0_13, %c0_14, %c0_15], %31 {strides = array<i32>} : memref<1x4x256xf32, #tpu.memory_space<vmem>>, vector<1x4x256xf32>,
    return
  }
  func.func @transform_0(%arg0: i32, %arg1: i32) -> (i32, i32, i32) {
    %c0_i32 = arith.constant 0 : i32
    %c0_i32_0 = arith.constant 0 : i32
    return %arg0, %c0_i32, %arg1 : i32, i32, i32
  }
  func.func @transform_1(%arg0: i32, %arg1: i32) -> (i32, i32, i32) {
    %c0_i32 = arith.constant 0 : i32
    %c0_i32_0 = arith.constant 0 : i32
    return %arg0, %c0_i32, %arg1 : i32, i32, i32
  }
  func.func @transform_2(%arg0: i32, %arg1: i32) -> (i32, i32) {
    %c0_i32 = arith.constant 0 : i32
    %c0_i32_0 = arith.constant 0 : i32
    %c0_i32_1 = arith.constant 0 : i32
    return %c0_i32, %c0_i32_0 : i32, i32
  }
  func.func @transform_3(%arg0: i32, %arg1: i32) -> (i32, i32) {
    %c0_i32 = arith.constant 0 : i32
    %c0_i32_0 = arith.constant 0 : i32
    %c0_i32_1 = arith.constant 0 : i32
    return %c0_i32, %c0_i32_0 : i32, i32
  }
  func.func @transform_4(%arg0: i32, %arg1: i32) -> (i32, i32, i32) {
    %c0_i32 = arith.constant 0 : i32
    %c0_i32_0 = arith.constant 0 : i32
    return %arg0, %c0_i32, %arg1 : i32, i32, i32
  }
}

</mosaic_0001>

<llo_original>
// kernel: tpu_custom_call.1
$region0: #{tpu_custom_call.1}
  #allocation0 [shape = 'u32[]', space=smem, size = 0x4, offset = 0x4, fixed_abs, tag = 'smem constant byte address 0x4 - core index']
  #allocation1 [shape = 'u32[72,128]{1,0:T(1,128)}', space=vmem, size = 0x9000, scoped, tag = 'internal scratch']
  %s0 = inlined_call_operand.vmem [shape: f32[2,4,256], index: 0, kind: input, shape index: {}]
  %s1 = inlined_call_operand.hbm [shape: f32[2,4,256], index: 1, kind: input, shape index: {}]
  %s2 = inlined_call_operand.vmem [shape: f32[8,4], index: 2, kind: input, shape index: {}]
  %s3 = inlined_call_operand.vmem [shape: f32[8,4], index: 3, kind: input, shape index: {}]
  %s4 = inlined_call_operand.hbm [shape: f32[2,4,256], index: 4, kind: output, shape index: {}]
  %s5 = sld [smem:[#allocation0]]
  $region53: #{tpu_custom_call.1} parent=0
    _
  %s7 = ssub.s32 1, %s5
  %s8 = scalar_select 0, %s7, %s5
  $region1: #{tpu_custom_call.1} parent=0
    #allocation2 [shape = 'u8[8192]{0}', space=vmem, size = 0x2000, scoped, tag = 'input window, operand 1']
    #allocation3 [shape = 's32[2]{0}', space=sflag, size = 0x8, scoped, tag = 'scoped memory for tpu_custom_call.1']
    #allocation4 [shape = 's32[2]{0}', space=sflag, size = 0x8, scoped, tag = 'scoped memory for tpu_custom_call.1']
    #allocation5 [shape = 'u8[8192]{0}', space=vmem, size = 0x2000, scoped, tag = 'output window, operand 0']
    %9 = vsyncpa [#allocation3], 0
    %s10 = scalar_lea.sflag [#allocation3], 1
    %11 = vsyncpa %s10, 0
    %12 = vsyncpa [#allocation4], 0
    %s13 = scalar_lea.sflag [#allocation4], 1
    %14 = vsyncpa %s13, 0
    loop: start=0, step=1, limit=4
    $region2: #{tpu_custom_call.1} parent=1 // loop_pre_header
      _
    $region3: #{tpu_custom_call.1} parent=1 // loop_header
      %s16 = sphi 0, %s20
      %p17 = scmp.ge.s32.totalorder %s16, 4
      %s23 = sphi 0, %s35
      %s24 = sphi 0, %s31
      %s25 = sphi 0, %s23
      %s26 = sphi 0, %s24
      %s27 = sphi 0, %s25
      %s28 = sphi 0, %s26
      %s40 = sphi 0, %s42
      %s43 = sphi 0, %s40
      %s44 = sphi 0, %s43
      %s60 = sphi 0, %s44
      %s68 = sphi 0, %s70
      %s71 = sphi 0, %s68
      %s72 = sphi 0, %s71
      %s88 = sphi 0, %s72
      %s92 = sphi 0, %s92
      %s94 = sphi 0, %s92
      %s95 = sphi 0, %s94
      %s109 = sphi 0, %s95
      %s113 = sphi 0, %s113
      %s115 = sphi 0, %s113
      %s116 = sphi 0, %s115
      %s130 = sphi 0, %s116
      %s138 = sphi 0, %s140
      %s141 = sphi 0, %s138
      %s142 = sphi 0, %s141
      %s158 = sphi 0, %s142
    $region4: #{tpu_custom_call.1} parent=1 // loop_header_branch
      %19 = sbr.rel (%p17) target = $region8
    $region5: #{tpu_custom_call.1} parent=1 // loop_body
      %s21 = ssub.s32 %s16, 1
      %s22 = ssub.s32 %s16, 2
      %s29 = sadd.s32 1, %s24
      %p30 = scmp.ge.s32.totalorder %s29, 1
      %s31 = scalar_select %p30, 0, %s29
      %s32 = sadd.s32 1, %s23
      %s33 = scalar_select %p30, %s32, %s23
      %p34 = scmp.ge.s32.totalorder %s33, 2
      %s35 = scalar_select %p34, 0, %s33
      %s36 = ssub.s32 %s23, %s35
      %s37 = ssub.s32 %s24, %s31
      %s38 = sor.u32 %s36, %s37
      %p39 = scmp.eq.s32.totalorder %s38, 0
      %s41 = sadd.s32 %s40, 1
      %s42 = scalar_select %p39, %s40, %s41
      %p45 = pneg %p39
      %p46 = scmp.eq.s32.totalorder %s16, 1
      %p47 = por %p45, %p46
      %p48 = scmp.ne.s32.totalorder %s40, %s43
      %p49 = scmp.eq.s32.totalorder %s16, 0
      %p50 = por %p48, %p49
      %p51 = scmp.ne.s32.totalorder %s40, %s43
      %p52 = scmp.eq.s32.totalorder %s21, 1
      %p53 = por %p51, %p52
      %p54 = scmp.ne.s32.totalorder %s43, %s44
      %p55 = scmp.eq.s32.totalorder %s21, 0
      %p56 = por %p54, %p55
      %p57 = scmp.ne.s32.totalorder %s43, %s44
      %p58 = scmp.eq.s32.totalorder %s22, 1
      %p59 = por %p57, %p58
      %p61 = scmp.ne.s32.totalorder %s44, %s60
      %p62 = scmp.eq.s32.totalorder %s22, 0
      %p63 = por %p61, %p62
      %s64 = ssub.s32 %s23, %s35
      %s65 = ssub.s32 %s24, %s31
      %s66 = sor.u32 %s64, %s65
      %p67 = scmp.eq.s32.totalorder %s66, 0
      %s69 = sadd.s32 %s68, 1
      %s70 = scalar_select %p67, %s68, %s69
      %p73 = pneg %p67
      %p74 = scmp.eq.s32.totalorder %s16, 1
      %p75 = por %p73, %p74
      %p76 = scmp.ne.s32.totalorder %s68, %s71
      %p77 = scmp.eq.s32.totalorder %s16, 0
      %p78 = por %p76, %p77
      %p79 = scmp.ne.s32.totalorder %s68, %s71
      %p80 = scmp.eq.s32.totalorder %s21, 1
      %p81 = por %p79, %p80
      %p82 = scmp.ne.s32.totalorder %s71, %s72
      %p83 = scmp.eq.s32.totalorder %s21, 0
      %p84 = por %p82, %p83
      %p85 = scmp.ne.s32.totalorder %s71, %s72
      %p86 = scmp.eq.s32.totalorder %s22, 1
      %p87 = por %p85, %p86
      %p89 = scmp.ne.s32.totalorder %s72, %s88
      %p90 = scmp.eq.s32.totalorder %s22, 0
      %p91 = por %p89, %p90
      %s93 = sadd.s32 %s92, 1
      %p96 = scmp.eq.s32.totalorder %s16, 1
      %p97 = scmp.ne.s32.totalorder %s92, %s94
      %p98 = scmp.eq.s32.totalorder %s16, 0
      %p99 = por %p97, %p98
      %p100 = scmp.ne.s32.totalorder %s92, %s94
      %p101 = scmp.eq.s32.totalorder %s21, 1
      %p102 = por %p100, %p101
      %p103 = scmp.ne.s32.totalorder %s94, %s95
      %p104 = scmp.eq.s32.totalorder %s21, 0
      %p105 = por %p103, %p104
      %p106 = scmp.ne.s32.totalorder %s94, %s95
      %p107 = scmp.eq.s32.totalorder %s22, 1
      %p108 = por %p106, %p107
      %p110 = scmp.ne.s32.totalorder %s95, %s109
      %p111 = scmp.eq.s32.totalorder %s22, 0
      %p112 = por %p110, %p111
      %s114 = sadd.s32 %s113, 1
      %p117 = scmp.eq.s32.totalorder %s16, 1
      %p118 = scmp.ne.s32.totalorder %s113, %s115
      %p119 = scmp.eq.s32.totalorder %s16, 0
      %p120 = por %p118, %p119
      %p121 = scmp.ne.s32.totalorder %s113, %s115
      %p122 = scmp.eq.s32.totalorder %s21, 1
      %p123 = por %p121, %p122
      %p124 = scmp.ne.s32.totalorder %s115, %s116
      %p125 = scmp.eq.s32.totalorder %s21, 0
      %p126 = por %p124, %p125
      %p127 = scmp.ne.s32.totalorder %s115, %s116
      %p128 = scmp.eq.s32.totalorder %s22, 1
      %p129 = por %p127, %p128
      %p131 = scmp.ne.s32.totalorder %s116, %s130
      %p132 = scmp.eq.s32.totalorder %s22, 0
      %p133 = por %p131, %p132
      %s134 = ssub.s32 %s23, %s35
      %s135 = ssub.s32 %s24, %s31
      %s136 = sor.u32 %s134, %s135
      %p137 = scmp.eq.s32.totalorder %s136, 0
      %s139 = sadd.s32 %s138, 1
      %s140 = scalar_select %p137, %s138, %s139
      %p143 = pneg %p137
      %p144 = scmp.eq.s32.totalorder %s16, 1
      %p145 = por %p143, %p144
      %p146 = scmp.ne.s32.totalorder %s138, %s141
      %p147 = scmp.eq.s32.totalorder %s16, 0
      %p148 = por %p146, %p147
      %p149 = scmp.ne.s32.totalorder %s138, %s141
      %p150 = scmp.eq.s32.totalorder %s21, 1
      %p151 = por %p149, %p150
      %p152 = scmp.ne.s32.totalorder %s141, %s142
      %p153 = scmp.eq.s32.totalorder %s21, 0
      %p154 = por %p152, %p153
      %p155 = scmp.ne.s32.totalorder %s141, %s142
      %p156 = scmp.eq.s32.totalorder %s22, 1
      %p157 = por %p155, %p156
      %p159 = scmp.ne.s32.totalorder %s142, %s158
      %p160 = scmp.eq.s32.totalorder %s22, 0
      %p161 = por %p159, %p160
      %p162 = scmp.le.s32.totalorder 1, %s16
      %p163 = scmp.lt.s32.totalorder %s16, 3
      %p164 = pnand %p162, %p163
      %p165 = pneg %p164
      // Predicated region
      $region9: #{tpu_custom_call.1} parent=5 // pred_check
        _
      $region10: #{tpu_custom_call.1} parent=5 // pred_check_branch
        %167 = sbr.rel (%p164) target = $region12
      $region11: #{tpu_custom_call.1} parent=5 // pred_region
        %s168 = ssub.s32 %s16, 1
        // Predicated region
        $region13: #{tpu_custom_call.1} parent=11 // pred_check
          %p169 = pneg %p105
        $region14: #{tpu_custom_call.1} parent=11 // pred_check_branch
          %171 = sbr.rel (%p169) target = $region16
        $region15: #{tpu_custom_call.1} parent=11 // pred_region
          _
        $region16: #{tpu_custom_call.1} parent=11 // pred_fallthru
          _
        // Predicated region
        $region17: #{tpu_custom_call.1} parent=11 // pred_check
          %p172 = pneg %p126
        $region18: #{tpu_custom_call.1} parent=11 // pred_check_branch
          %174 = sbr.rel (%p172) target = $region20
        $region19: #{tpu_custom_call.1} parent=11 // pred_region
          _
        $region20: #{tpu_custom_call.1} parent=11 // pred_fallthru
          _
      $region12: #{tpu_custom_call.1} parent=5 // pred_fallthru
        _
      %p175 = scmp.lt.s32.totalorder %s16, 2
      // Predicated region
      $region21: #{tpu_custom_call.1} parent=5 // pred_check
        %p176 = pneg %p175
      $region22: #{tpu_custom_call.1} parent=5 // pred_check_branch
        %178 = sbr.rel (%p176) target = $region24
      $region23: #{tpu_custom_call.1} parent=5 // pred_region
        // Predicated region
        $region25: #{tpu_custom_call.1} parent=23 // pred_check
          %p179 = pneg %p50
        $region26: #{tpu_custom_call.1} parent=23 // pred_check_branch
          %181 = sbr.rel (%p179) target = $region28
        $region27: #{tpu_custom_call.1} parent=23 // pred_region
          %s182 = smul.u32 2, %s24
          %p183 = scmp.lt.s32.totalorder %s23, 1
          %s184 = scalar_select %p183, %s23, 1
          %p185 = scmp.lt.s32.totalorder %s182, 1
          %s186 = scalar_select %p185, %s182, 1
          %s187 = smul.addr %s184, 2
          %s188 = sadd.s32 %s186, %s187
          %s189 = smul.addr %s188, 4
          %s190 = scalar_lea.vmem %s0, %s189
          %s191 = smul.u32 2, %s24
        $region28: #{tpu_custom_call.1} parent=23 // pred_fallthru
          _
        // Predicated region
        $region29: #{tpu_custom_call.1} parent=23 // pred_check
          %p192 = pneg %p78
        $region30: #{tpu_custom_call.1} parent=23 // pred_check_branch
          %194 = sbr.rel (%p192) target = $region32
        $region31: #{tpu_custom_call.1} parent=23 // pred_region
          %s195 = sand.u32 %s68, 1
          %s196 = scalar_lea.sflag [#allocation3], %s195
          %s197 = sand.u32 %s68, 1
          %s198 = smul.addr %s197, 8
          %s199 = scalar_lea.vmem [#allocation2], %s198
          %s200 = smul.u32 2, %s24
          %202 = vsyncadd %s196, 0
          %s203 = smul.addr %s23, 2
          %s204 = sadd.s32 %s200, %s203
          %s205 = smul.addr %s204, 4
          %s206 = scalar_lea.hbm %s1, %s205
          %s208 = sshll.u32 %s206, 4
          %s209 = int_to_ptr.hbm [resolvable:$true] %s208
          %s210 = sshll.u32 %s199, 4
          %s211 = int_to_ptr.vmem [resolvable:$true] %s210
          %213 = dma.hbm_to_vmem [thread:$0]  %s209, 128, %s211, %s196
        $region32: #{tpu_custom_call.1} parent=23 // pred_fallthru
          _
      $region24: #{tpu_custom_call.1} parent=5 // pred_fallthru
        _
      %p214 = scmp.le.s32.totalorder 1, %s16
      %p215 = scmp.lt.s32.totalorder %s16, 3
      %p216 = pnand %p214, %p215
      %p217 = pneg %p216
      // Predicated region
      $region33: #{tpu_custom_call.1} parent=5 // pred_check
        _
      $region34: #{tpu_custom_call.1} parent=5 // pred_check_branch
        %219 = sbr.rel (%p216) target = $region36
      $region35: #{tpu_custom_call.1} parent=5 // pred_region
        %s220 = ssub.s32 %s16, 1
        %s221 = sand.u32 %s71, 1
        %s222 = scalar_lea.sflag [#allocation3], %s221
        %s223 = sand.u32 %s71, 1
        %s224 = smul.addr %s223, 8
        %s225 = scalar_lea.vmem [#allocation2], %s224
        // Predicated region
        $region37: #{tpu_custom_call.1} parent=35 // pred_check
          %p226 = pneg %p84
        $region38: #{tpu_custom_call.1} parent=35 // pred_check_branch
          %228 = sbr.rel (%p226) target = $region40
        $region39: #{tpu_custom_call.1} parent=35 // pred_region
          %230 = dma.done %s222, 128
        $region40: #{tpu_custom_call.1} parent=35 // pred_fallthru
          _
        %s231 = smul.u32 2, %s26
        %p232 = scmp.lt.s32.totalorder %s25, 1
        %s233 = scalar_select %p232, %s25, 1
        %p234 = scmp.lt.s32.totalorder %s231, 1
        %s235 = scalar_select %p234, %s231, 1
        %s236 = smul.addr %s233, 2
        %s237 = sadd.s32 %s235, %s236
        %s238 = smul.addr %s237, 4
        %s239 = scalar_lea.vmem %s0, %s238
        %p240 = pneg %p56
        %p241 = pneg %p53
        %s242 = sand.u32 %s71, 1
        %s243 = scalar_lea.sflag [#allocation3], %s242
        %s244 = sand.u32 %s71, 1
        %s245 = smul.addr %s244, 8
        %s246 = scalar_lea.vmem [#allocation2], %s245
        %p247 = pneg %p84
        %p248 = pneg %p81
        %p249 = pneg %p105
        %p250 = pneg %p102
        %p251 = pneg %p126
        %p252 = pneg %p123
        %p253 = pneg %p154
        %p254 = pneg %p151
        %s255 = sand.u32 %s141, 1
        %s256 = scalar_lea.sflag [#allocation4], %s255
        %s257 = sand.u32 %s141, 1
        %s258 = smul.addr %s257, 8
        %s259 = scalar_lea.vmem [#allocation5], %s258
        %s260 = smul.u32 2, %s26
        %p261 = scmp.lt.s32.totalorder %s25, 1
        %s262 = scalar_select %p261, %s25, 1
        %p263 = scmp.lt.s32.totalorder %s260, 1
        %s264 = scalar_select %p263, %s260, 1
        %s265 = smul.addr %s262, 2
        %s266 = sadd.s32 %s264, %s265
        %s267 = smul.addr %s266, 4
        %s268 = scalar_lea.vmem %s0, %s267
        %s269 = smul.u32 2, %s26
        %s270 = smul.u32 2, %s26
        %s271 = smul.u32 2, %s26
        %v272 = vld [vmem:[%s268] sm:$0xff]
        %v273 = vld [vmem:[%s225] sm:$0xff]
        %v274 = vld [vmem:[%s2] sm:$0xff]
        %v275 = vld [vmem:[%s3] sm:$0xff]
        %277 = vst [vmem:[#allocation1] ss:$2 sm:$0xff] %v272
        %v278 = vld.sshfl [vmem:[#allocation1] sm:$0xff pattern:$0x75316420]
        %v279 = vld.sshfl [vmem:[#allocation1 + $0x8] sm:$0xff pattern:$0x75316420]
        %vm280 = vcmask 31744
        %v282 = vsel %vm280, %v274, 0
        %vm284 = vcmask 1043456
        %v285 = vsel %vm284, %v278, 0
        %v287 = vsel %vm284, %v279, 0
        %289 = vmatpush.msra.mxu0 0.0
        %290 = vmatpush.msra.mxu0 0.0
        %291 = vmatpush.msra.mxu0 0.0
        %292 = vmatpush.msra.mxu0 0.0
        %293 = vmatpush.msra.mxu0 0.0
        %294 = vmatpush.msra.mxu0 0.0
        %295 = vmatpush.msra.mxu0 0.0
        %296 = vmatpush.msra.mxu0 0.0
        %297 = vmatpush.msra.mxu0 0.0
        %298 = vmatpush.msra.mxu0 0.0
        %299 = vmatpush.msra.mxu0 0.0
        %300 = vmatpush.msra.mxu0 0.0
        %301 = vmatpush.msra.mxu0 0.0
        %302 = vmatpush.msra.mxu0 0.0
        %303 = vmatpush.msra.mxu0 0.0
        %304 = vmatpush.msra.mxu0 %v285
        %305 = vmatmul.f32.gmra.mxu0 %v282
        %v306 = vpop.f32.mrf.mxu0
        %v307 = vadd.f32 0.0, %v306
        %308 = vdwg.mxu0
        %309 = vmatpush.msra.mxu0 0.0
        %310 = vmatpush.msra.mxu0 0.0
        %311 = vmatpush.msra.mxu0 0.0
        %312 = vmatpush.msra.mxu0 0.0
        %313 = vmatpush.msra.mxu0 0.0
        %314 = vmatpush.msra.mxu0 0.0
        %315 = vmatpush.msra.mxu0 0.0
        %316 = vmatpush.msra.mxu0 0.0
        %317 = vmatpush.msra.mxu0 0.0
        %318 = vmatpush.msra.mxu0 0.0
        %319 = vmatpush.msra.mxu0 0.0
        %320 = vmatpush.msra.mxu0 0.0
        %321 = vmatpush.msra.mxu0 0.0
        %322 = vmatpush.msra.mxu0 0.0
        %323 = vmatpush.msra.mxu0 0.0
        %324 = vmatpush.msra.mxu0 %v287
        %325 = vmatmul.f32.gmra.mxu0 %v282
        %v326 = vpop.f32.mrf.mxu0
        %v327 = vadd.f32 0.0, %v326
        %328 = vdwg.mxu0
        %330 = vst [vmem:[#allocation1] ss:$2 sm:$0xff] %v273
        %v331 = vld.sshfl [vmem:[#allocation1] sm:$0xff pattern:$0x75316420]
        %v332 = vld.sshfl [vmem:[#allocation1 + $0x8] sm:$0xff pattern:$0x75316420]
        %v334 = vsel %vm280, %v275, 0
        %v336 = vsel %vm284, %v331, 0
        %v338 = vsel %vm284, %v332, 0
        %340 = vmatpush.msra.mxu0 0.0
        %341 = vmatpush.msra.mxu0 0.0
        %342 = vmatpush.msra.mxu0 0.0
        %343 = vmatpush.msra.mxu0 0.0
        %344 = vmatpush.msra.mxu0 0.0
        %345 = vmatpush.msra.mxu0 0.0
        %346 = vmatpush.msra.mxu0 0.0
        %347 = vmatpush.msra.mxu0 0.0
        %348 = vmatpush.msra.mxu0 0.0
        %349 = vmatpush.msra.mxu0 0.0
        %350 = vmatpush.msra.mxu0 0.0
        %351 = vmatpush.msra.mxu0 0.0
        %352 = vmatpush.msra.mxu0 0.0
        %353 = vmatpush.msra.mxu0 0.0
        %354 = vmatpush.msra.mxu0 0.0
        %355 = vmatpush.msra.mxu0 %v336
        %356 = vmatmul.f32.gmra.mxu0 %v334
        %v357 = vpop.f32.mrf.mxu0
        %v358 = vadd.f32 0.0, %v357
        %359 = vdwg.mxu0
        %360 = vmatpush.msra.mxu0 0.0
        %361 = vmatpush.msra.mxu0 0.0
        %362 = vmatpush.msra.mxu0 0.0
        %363 = vmatpush.msra.mxu0 0.0
        %364 = vmatpush.msra.mxu0 0.0
        %365 = vmatpush.msra.mxu0 0.0
        %366 = vmatpush.msra.mxu0 0.0
        %367 = vmatpush.msra.mxu0 0.0
        %368 = vmatpush.msra.mxu0 0.0
        %369 = vmatpush.msra.mxu0 0.0
        %370 = vmatpush.msra.mxu0 0.0
        %371 = vmatpush.msra.mxu0 0.0
        %372 = vmatpush.msra.mxu0 0.0
        %373 = vmatpush.msra.mxu0 0.0
        %374 = vmatpush.msra.mxu0 0.0
        %375 = vmatpush.msra.mxu0 %v338
        %376 = vmatmul.f32.gmra.mxu0 %v334
        %v377 = vpop.f32.mrf.mxu0
        %v378 = vadd.f32 0.0, %v377
        %379 = vdwg.mxu0
        %v380 = vxor.u32 %v307, 2147483648
        %v381 = vxor.u32 %v327, 2147483648
        %v382 = vmul.f32 %v380, 1.442695
        %v383 = vpow.pop %v382
        %v384 = vmul.f32 %v381, 1.442695
        %v385 = vpow.pop %v384
        %v386 = vadd.f32 %v383, 1.0
        %v387 = vadd.f32 %v385, 1.0
        %v388 = vrcp.pop %v386
        %v389 = vmul.f32 %v386, %v388
        %v390 = vsub.f32 1.0, %v389
        %v391 = vmul.f32 %v388, %v390
        %v392 = vadd.f32 %v388, %v391
        %vm393 = vweird.f32 %v386
        %vm394 = vweird.f32 %v388
        %vm395 = vmor %vm393, %vm394
        %v396 = vsel %vm395, %v388, %v392
        %v397 = vand.u32 2147483647, %v386
        %vm398 = vcmp.eq.f32.partialorder %v397, 8.507059e+37
        %v399 = vand.u32 %v386, 2147483648
        %v400 = vor.u32 1.1754944e-38, %v399
        %v401 = vsel %vm398, %v400, %v396
        %v402 = vmul.f32 1.0, %v401
        %v403 = vrcp.pop %v387
        %v404 = vmul.f32 %v387, %v403
        %v405 = vsub.f32 1.0, %v404
        %v406 = vmul.f32 %v403, %v405
        %v407 = vadd.f32 %v403, %v406
        %vm408 = vweird.f32 %v387
        %vm409 = vweird.f32 %v403
        %vm410 = vmor %vm408, %vm409
        %v411 = vsel %vm410, %v403, %v407
        %v412 = vand.u32 2147483647, %v387
        %vm413 = vcmp.eq.f32.partialorder %v412, 8.507059e+37
        %v414 = vand.u32 %v387, 2147483648
        %v415 = vor.u32 1.1754944e-38, %v414
        %v416 = vsel %vm413, %v415, %v411
        %v417 = vmul.f32 1.0, %v416
        %v418 = vxor.u32 %v358, 2147483648
        %v419 = vxor.u32 %v378, 2147483648
        %v420 = vmul.f32 %v418, 1.442695
        %v421 = vpow.pop %v420
        %v422 = vmul.f32 %v419, 1.442695
        %v423 = vpow.pop %v422
        %v424 = vadd.f32 %v421, 1.0
        %v425 = vadd.f32 %v423, 1.0
        %v426 = vrcp.pop %v424
        %v427 = vmul.f32 %v424, %v426
        %v428 = vsub.f32 1.0, %v427
        %v429 = vmul.f32 %v426, %v428
        %v430 = vadd.f32 %v426, %v429
        %vm431 = vweird.f32 %v424
        %vm432 = vweird.f32 %v426
        %vm433 = vmor %vm431, %vm432
        %v434 = vsel %vm433, %v426, %v430
        %v435 = vand.u32 2147483647, %v424
        %vm436 = vcmp.eq.f32.partialorder %v435, 8.507059e+37
        %v437 = vand.u32 %v424, 2147483648
        %v438 = vor.u32 1.1754944e-38, %v437
        %v439 = vsel %vm436, %v438, %v434
        %v440 = vmul.f32 1.0, %v439
        %v441 = vrcp.pop %v425
        %v442 = vmul.f32 %v425, %v441
        %v443 = vsub.f32 1.0, %v442
        %v444 = vmul.f32 %v441, %v443
        %v445 = vadd.f32 %v441, %v444
        %vm446 = vweird.f32 %v425
        %vm447 = vweird.f32 %v441
        %vm448 = vmor %vm446, %vm447
        %v449 = vsel %vm448, %v441, %v445
        %v450 = vand.u32 2147483647, %v425
        %vm451 = vcmp.eq.f32.partialorder %v450, 8.507059e+37
        %v452 = vand.u32 %v425, 2147483648
        %v453 = vor.u32 1.1754944e-38, %v452
        %v454 = vsel %vm451, %v453, %v449
        %v455 = vmul.f32 1.0, %v454
        %v456 = vadd.f32 %v307, %v358
        %v457 = vadd.f32 %v327, %v378
        %v458 = vadd.f32 %v272, %v273
        %v459 = vadd.f32 %v402, %v440
        %v460 = vadd.f32 %v417, %v455
        %v463 = vrot.slane %v459, 4
        %v464 = vrot.slane %v460, 4
        %v467 = vmul.f32 %v456, %v463
        %v468 = vmul.f32 %v457, %v464
        %471 = vst.sshfl [vmem:[#allocation1] sm:$0xff pattern:$0x75316420] %v467
        %472 = vst.sshfl [vmem:[#allocation1 + $0x8] sm:$0xff pattern:$0x75316420] %v468
        %s473 = scalar_lea.vmem [#allocation1], 1
        %v474 = vld [vmem:[%s473] ss:$2 sm:$0xff]
        %v476 = vadd.f32 %v458, %v474
        %v477 = vmax.f32 %v476, 0.0
        %478 = vst [vmem:[%s259] sm:$0xff] %v477
        %s479 = sand.u32 %s141, 1
        %s480 = scalar_lea.sflag [#allocation4], %s479
        %s481 = sand.u32 %s141, 1
        %s482 = smul.addr %s481, 8
        %s483 = scalar_lea.vmem [#allocation5], %s482
        // Predicated region
        $region41: #{tpu_custom_call.1} parent=35 // pred_check
          %p484 = pneg %p151
        $region42: #{tpu_custom_call.1} parent=35 // pred_check_branch
          %486 = sbr.rel (%p484) target = $region44
        $region43: #{tpu_custom_call.1} parent=35 // pred_region
          %s487 = smul.u32 2, %s26
          %489 = vsyncadd %s480, 0
          %s490 = smul.addr %s25, 2
          %s491 = sadd.s32 %s487, %s490
          %s492 = smul.addr %s491, 4
          %s493 = scalar_lea.hbm %s4, %s492
          %s495 = sshll.u32 %s483, 4
          %s496 = int_to_ptr.vmem [resolvable:$true] %s495
          %s497 = sshll.u32 %s493, 4
          %s498 = int_to_ptr.hbm [resolvable:$true] %s497
          %500 = dma.vmem_to_hbm [thread:$0]  %s496, 128, %s498, %s480
        $region44: #{tpu_custom_call.1} parent=35 // pred_fallthru
          _
      $region36: #{tpu_custom_call.1} parent=5 // pred_fallthru
        _
      %p501 = scmp.le.s32.totalorder 2, %s16
      // Predicated region
      $region45: #{tpu_custom_call.1} parent=5 // pred_check
        %p502 = pneg %p501
      $region46: #{tpu_custom_call.1} parent=5 // pred_check_branch
        %504 = sbr.rel (%p502) target = $region48
      $region47: #{tpu_custom_call.1} parent=5 // pred_region
        %s505 = ssub.s32 %s16, 2
        // Predicated region
        $region49: #{tpu_custom_call.1} parent=47 // pred_check
          %p506 = pneg %p157
        $region50: #{tpu_custom_call.1} parent=47 // pred_check_branch
          %508 = sbr.rel (%p506) target = $region52
        $region51: #{tpu_custom_call.1} parent=47 // pred_region
          %s509 = sand.u32 %s142, 1
          %s510 = scalar_lea.sflag [#allocation4], %s509
          %s511 = sand.u32 %s142, 1
          %s512 = smul.addr %s511, 8
          %s513 = scalar_lea.vmem [#allocation5], %s512
          %515 = dma.done %s510, 128
        $region52: #{tpu_custom_call.1} parent=47 // pred_fallthru
          _
      $region48: #{tpu_custom_call.1} parent=5 // pred_fallthru
        _
    $region6: #{tpu_custom_call.1} parent=1 // loop_footer
      %s20 = sadd.s32 1, %s16
    $region7: #{tpu_custom_call.1} parent=1 // loop_footer_branch
      %15 = sbr.rel target = $region3
    $region8: #{tpu_custom_call.1} parent=1 // loop_exit
      _
    %516 = vsyncpa [#allocation3], 1
    %s517 = scalar_lea.sflag [#allocation3], 1
    %518 = vsyncpa %s517, 1
    %519 = vsyncpa [#allocation4], 1
    %s520 = scalar_lea.sflag [#allocation4], 1
    %521 = vsyncpa %s520, 1

</llo_original>
